<compile_context>
chip_gen: v5e
topology: v5e:2x2
jax: 0.10.0
libtpu: 0.0.40
codegen_flags: <defaults>
</compile_context>

<pallas_src>
import functools

import jax
import jax.numpy as jnp
from jax import lax
from jax.experimental import pallas as pl
from jax.experimental.pallas import tpu as pltpu

EPS = 1e-6
_LANES = 128
_SUBLANES = 8
_ACC_ROWS_MAX = 512          # fixed-height VMEM accumulators (decoupled from block)
_MIN_KERNEL_ELEMENTS = 1024  # below this a pure-XLA reduction beats kernel launch


def _round_up(x: int, m: int) -> int:
    return ((x + m - 1) // m) * m


def _chip_profile():
    """Per-generation (bytes per input tile, core-split) for the streaming loop."""
    kind = ""
    try:
        kind = jax.devices()[0].device_kind.lower()
    except Exception:
        pass
    if "v5 lite" in kind or "v5e" in kind or "v5lite" in kind:
        # 16 MiB default scoped VMEM -> keep tiles at ~1 MiB each.
        return 1 << 20, 1
    if "v7" in kind:
        # Dual TensorCore, 3.2 TB/s per TC -> 2 MiB tiles, split rows over 2 cores.
        return 2 << 20, 2
    # v6e / unknown single-core default.
    return 2 << 20, 1


def _dice_kernel(p_ref, t_ref, o_ref, inter_acc, sq_acc, *,
                 rows, block_rows, steps, acc_rows, needs_mask):
    c = pl.program_id(0)   # core split axis ("parallel")
    j = pl.program_id(1)   # reduction axis (last, "arbitrary")

    @pl.when(j == 0)
    def _init():
        inter_acc[...] = jnp.zeros_like(inter_acc)
        sq_acc[...] = jnp.zeros_like(sq_acc)

    p = p_ref[...].astype(jnp.float32)
    t = t_ref[...].astype(jnp.float32)

    fold_k = block_rows // acc_rows

    def _accumulate(pv, tv):
        inter = pv * tv
        sq = pv * pv + tv * tv
        if fold_k > 1:
            # Fold the tall block into the fixed-height accumulator (VALU adds,
            # hidden under the per-step DMA).
            inter = inter.reshape(fold_k, acc_rows, _LANES).sum(axis=0)
            sq = sq.reshape(fold_k, acc_rows, _LANES).sum(axis=0)
        inter_acc[...] += inter
        sq_acc[...] += sq

    if needs_mask:
        block_start = (c * steps + j) * block_rows
        is_ragged = block_start + block_rows > rows

        @pl.when(is_ragged)
        def _masked():
            # Rows beyond `rows` hold unspecified (stale) data; select them to 0
            # with jnp.where (a multiply-mask could propagate garbage NaNs).
            row_ids = block_start + lax.broadcasted_iota(
                jnp.int32, (block_rows, _LANES), 0)
            valid = row_ids < rows
            _accumulate(jnp.where(valid, p, 0.0), jnp.where(valid, t, 0.0))

        @pl.when(jnp.logical_not(is_ragged))
        def _clean():
            _accumulate(p, t)
    else:
        _accumulate(p, t)

    @pl.when(j == pl.num_programs(1) - 1)
    def _finalize():
        # Fold the accumulators down to one (8,128) vreg of partials per core;
        # the final tiny cross-lane reduce happens in the XLA epilogue.
        inter_p = inter_acc[...].reshape(
            acc_rows // _SUBLANES, _SUBLANES, _LANES).sum(axis=0)
        sq_p = sq_acc[...].reshape(
            acc_rows // _SUBLANES, _SUBLANES, _LANES).sum(axis=0)
        o_ref[0, 0:_SUBLANES, :] = inter_p
        o_ref[0, _SUBLANES:2 * _SUBLANES, :] = sq_p


def dice_coefficient(prediction: jax.Array, target: jax.Array,
                     eps: float = EPS) -> jax.Array:
    assert prediction.shape == target.shape
    total = int(prediction.size)
    if total == 0:
        return jnp.float32(0.0)

    if total < _MIN_KERNEL_ELEMENTS:
        # Kernel launch + epilogue dispatch would dominate; do it in plain XLA.
        p32 = prediction.astype(jnp.float32)
        t32 = target.astype(jnp.float32)
        inter = jnp.sum(p32 * t32)
        denom = jnp.maximum(jnp.sum(p32 * p32) + jnp.sum(t32 * t32),
                            jnp.float32(eps))
        return 2.0 * inter / denom

    tile_bytes, num_splits = _chip_profile()
    p_item = jnp.dtype(prediction.dtype).itemsize
    t_item = jnp.dtype(target.dtype).itemsize
    itemsize = max(p_item, t_item)

    def to_slab(x):
        flat = jnp.ravel(x)                      # free for contiguous arrays
        if total % _LANES != 0:
            # TODO(synk): lane-unaligned totals still need one small pad copy;
            # a fully copy-free path would require a manual 1-D DMA design.
            flat = jnp.pad(flat, (0, _LANES - total % _LANES))
        return flat.reshape(-1, _LANES)

    p2 = to_slab(prediction)
    t2 = to_slab(target)
    rows = int(p2.shape[0])                      # >= 8 since total >= 1024

    # Scale block rows by itemsize so per-step DMA bytes stay ~constant for
    # narrow dtypes; keep sublane alignment; never start a block out of bounds.
    target_rows = max(_SUBLANES, tile_bytes // (_LANES * itemsize))
    block_rows = _round_up(min(target_rows, rows), _SUBLANES)
    if block_rows >= _ACC_ROWS_MAX:
        block_rows = (block_rows // _ACC_ROWS_MAX) * _ACC_ROWS_MAX
        acc_rows = _ACC_ROWS_MAX
    else:
        acc_rows = block_rows

    total_blocks = int(pl.cdiv(rows, block_rows))
    steps = int(pl.cdiv(total_blocks, num_splits))
    needs_mask = (num_splits * steps * block_rows) != rows

    def in_index_map(c, j):
        # Clamp phantom / over-covering steps onto the last valid block; the
        # in-kernel row mask zeroes their contribution, so no wrapper padding
        # and no fully out-of-bounds DMA is ever issued.
        return (jnp.minimum(c * steps + j, total_blocks - 1), 0)

    kernel = functools.partial(
        _dice_kernel,
        rows=rows, block_rows=block_rows, steps=steps,
        acc_rows=acc_rows, needs_mask=needs_mask)

    in_tile_bytes = block_rows * _LANES * itemsize
    footprint = 4 * in_tile_bytes + 2 * acc_rows * _LANES * 4 + (1 << 20)
    try:
        cap = int(pltpu.get_tpu_info().vmem_capacity_bytes)
        vmem_limit = int(min(cap * 3 // 4, max(32 << 20, 2 * footprint)))
    except Exception:
        vmem_limit = None

    cost = pl.CostEstimate(
        flops=5 * total,
        transcendentals=0,
        bytes_accessed=total * (p_item + t_item)
        + num_splits * 2 * _SUBLANES * _LANES * 4,
    )

    out = pl.pallas_call(
        kernel,
        out_shape=jax.ShapeDtypeStruct(
            (num_splits, 2 * _SUBLANES, _LANES), jnp.float32),
        grid_spec=pltpu.PrefetchScalarGridSpec(
            num_scalar_prefetch=0,
            grid=(num_splits, steps),
            in_specs=[
                pl.BlockSpec((block_rows, _LANES), in_index_map),
                pl.BlockSpec((block_rows, _LANES), in_index_map),
            ],
            out_specs=pl.BlockSpec((1, 2 * _SUBLANES, _LANES),
                                   lambda c, j: (c, 0, 0)),
            scratch_shapes=[
                pltpu.VMEM((acc_rows, _LANES), jnp.float32),
                pltpu.VMEM((acc_rows, _LANES), jnp.float32),
            ],
        ),
        compiler_params=pltpu.CompilerParams(
            # TODO(synk): profile on v7x; if the size-2 axis executes as a
            # serial loop, switch it to pltpu.CORE_PARALLEL / core_map split.
            dimension_semantics=("parallel", "arbitrary"),
            vmem_limit_bytes=vmem_limit,
        ),
        cost_estimate=cost,
    )(p2, t2)

    # Tiny final combine (num_splits x 16 x 128 partials) in plain XLA.
    intersection = jnp.sum(out[:, 0:_SUBLANES, :])
    denominator = jnp.maximum(jnp.sum(out[:, _SUBLANES:2 * _SUBLANES, :]),
                              jnp.float32(eps))
    return 2.0 * intersection / denominator


def _reference(prediction, target, eps=EPS):
    p32 = prediction.astype(jnp.float32)
    t32 = target.astype(jnp.float32)
    inter = jnp.sum(p32 * t32)
    denom = jnp.maximum(jnp.sum(p32 * p32) + jnp.sum(t32 * t32), eps)
    return 2.0 * inter / denom


if __name__ == "__main__":
    key = jax.random.PRNGKey(0)

    # 1) Small NCHW segmentation-style shape (lane-aligned, single block).
    kp, kt, key = jax.random.split(key, 3)
    prediction = jax.nn.sigmoid(jax.random.normal(kp, (2, 4, 16, 16), jnp.float32))
    target = (jax.random.uniform(kt, (2, 4, 16, 16)) > 0.5).astype(jnp.float32)
    dice = jax.block_until_ready(dice_coefficient(prediction, target))
    ref = _reference(prediction, target)
    assert jnp.allclose(dice, ref, rtol=1e-5, atol=1e-6), (dice, ref)

    # 2) Lane-unaligned total -> exercises the in-kernel ragged-tail mask path.
    kp, kt, key = jax.random.split(key, 3)
    p2 = jax.nn.sigmoid(jax.random.normal(kp, (2, 3, 100, 129), jnp.float32))
    t2 = (jax.random.uniform(kt, (2, 3, 100, 129)) > 0.5).astype(jnp.float32)
    dice2 = jax.block_until_ready(dice_coefficient(p2, t2))
    ref2 = _reference(p2, t2)
    assert jnp.allclose(dice2, ref2, rtol=1e-5, atol=1e-6), (dice2, ref2)

    # 3) Multi-block case -> exercises the accumulation loop + fold.
    kp, kt, key = jax.random.split(key, 3)
    p3 = jax.nn.sigmoid(jax.random.normal(kp, (8, 16, 64, 80), jnp.float32))
    t3 = (jax.random.uniform(kt, (8, 16, 64, 80)) > 0.5).astype(jnp.float32)
    dice3 = jax.block_until_ready(dice_coefficient(p3, t3))
    ref3 = _reference(p3, t3)
    assert jnp.allclose(dice3, ref3, rtol=1e-5, atol=1e-6), (dice3, ref3)

    print("KERNEL_OK")
</pallas_src>

<mosaic_0001>
module attributes {stable_mosaic.version = 11 : i64} {
  func.func @_dice_kernel(%arg0: i32, %arg1: i32, %arg2: memref<16x128xf32, #tpu.memory_space<vmem>>, %arg3: memref<16x128xf32, #tpu.memory_space<vmem>>, %arg4: memref<1x16x128xf32, #tpu.memory_space<vmem>>, %arg5: memref<16x128xf32, #tpu.memory_space<vmem>>, %arg6: memref<16x128xf32, #tpu.memory_space<vmem>>) attributes {dimension_semantics = [#tpu.dimension_semantics<parallel>, #tpu.dimension_semantics<arbitrary>], iteration_bounds = array<i64: 1, 1>, scalar_prefetch = 0 : i64, scratch_operands = 2 : i64, tpu.core_type = #tpu.core_type<tc>, window_params = [{transform_indices = @transform_0, window_bounds = array<i64: 16, 128>}, {transform_indices = @transform_1, window_bounds = array<i64: 16, 128>}, {transform_indices = @transform_2, window_bounds = array<i64: 1, 16, 128>}]} {
    %c0_i32 = arith.constant 0 : i32
    %0 = arith.cmpi eq, %arg1, %c0_i32 : i32
    %1 = arith.extui %0 : i1 to i32
    %c0_i32_0 = arith.constant 0 : i32
    %2 = arith.cmpi ne, %1, %c0_i32_0 : i32
    scf.if %2 {
      %cst = arith.constant 0.000000e+00 : f32
      %18 = vector.broadcast %cst : f32 to vector<16x128xf32>
      %c0_14 = arith.constant 0 : index
      %c0_15 = arith.constant 0 : index
      %19 = vector.load %arg5[%c0_14, %c0_15] : memref<16x128xf32, #tpu.memory_space<vmem>>, vector<16x128xf32>
      tpu.vector_store %arg5[%c0_14, %c0_15], %18 {strides = array<i32>} : memref<16x128xf32, #tpu.memory_space<vmem>>, vector<16x128xf32>,
      %cst_16 = arith.constant 0.000000e+00 : f32
      %20 = vector.broadcast %cst_16 : f32 to vector<16x128xf32>
      %c0_17 = arith.constant 0 : index
      %c0_18 = arith.constant 0 : index
      %21 = vector.load %arg6[%c0_17, %c0_18] : memref<16x128xf32, #tpu.memory_space<vmem>>, vector<16x128xf32>
      tpu.vector_store %arg6[%c0_17, %c0_18], %20 {strides = array<i32>} : memref<16x128xf32, #tpu.memory_space<vmem>>, vector<16x128xf32>,
    } else {
    }
    %c0 = arith.constant 0 : index
    %c0_1 = arith.constant 0 : index
    %3 = vector.load %arg2[%c0, %c0_1] : memref<16x128xf32, #tpu.memory_space<vmem>>, vector<16x128xf32>
    %c0_2 = arith.constant 0 : index
    %c0_3 = arith.constant 0 : index
    %4 = vector.load %arg3[%c0_2, %c0_3] : memref<16x128xf32, #tpu.memory_space<vmem>>, vector<16x128xf32>
    %5 = arith.mulf %3, %4 : vector<16x128xf32>
    %6 = arith.mulf %3, %3 : vector<16x128xf32>
    %7 = arith.mulf %4, %4 : vector<16x128xf32>
    %8 = arith.addf %6, %7 : vector<16x128xf32>
    %c0_4 = arith.constant 0 : index
    %c0_5 = arith.constant 0 : index
    %9 = vector.load %arg5[%c0_4, %c0_5] : memref<16x128xf32, #tpu.memory_space<vmem>>, vector<16x128xf32>
    %10 = arith.addf %9, %5 : vector<16x128xf32>
    %c0_6 = arith.constant 0 : index
    %c0_7 = arith.constant 0 : index
    %11 = vector.load %arg5[%c0_6, %c0_7] : memref<16x128xf32, #tpu.memory_space<vmem>>, vector<16x128xf32>
    tpu.vector_store %arg5[%c0_6, %c0_7], %10 {strides = array<i32>} : memref<16x128xf32, #tpu.memory_space<vmem>>, vector<16x128xf32>,
    %c0_8 = arith.constant 0 : index
    %c0_9 = arith.constant 0 : index
    %12 = vector.load %arg6[%c0_8, %c0_9] : memref<16x128xf32, #tpu.memory_space<vmem>>, vector<16x128xf32>
    %13 = arith.addf %12, %8 : vector<16x128xf32>
    %c0_10 = arith.constant 0 : index
    %c0_11 = arith.constant 0 : index
    %14 = vector.load %arg6[%c0_10, %c0_11] : memref<16x128xf32, #tpu.memory_space<vmem>>, vector<16x128xf32>
    tpu.vector_store %arg6[%c0_10, %c0_11], %13 {strides = array<i32>} : memref<16x128xf32, #tpu.memory_space<vmem>>, vector<16x128xf32>,
    %c0_i32_12 = arith.constant 0 : i32
    %15 = arith.cmpi eq, %arg1, %c0_i32_12 : i32
    %16 = arith.extui %15 : i1 to i32
    %c0_i32_13 = arith.constant 0 : i32
    %17 = arith.cmpi ne, %16, %c0_i32_13 : i32
    scf.if %17 {
      %c0_14 = arith.constant 0 : index
      %c0_15 = arith.constant 0 : index
      %18 = vector.load %arg5[%c0_14, %c0_15] : memref<16x128xf32, #tpu.memory_space<vmem>>, vector<16x128xf32>
      %19 = vector.shape_cast %18 : vector<16x128xf32> to vector<2x8x128xf32>
      %cst = arith.constant dense<0.000000e+00> : vector<8x128xf32>
      %20 = vector.multi_reduction <add>, %19, %cst [0] : vector<2x8x128xf32> to vector<8x128xf32>
      %c0_16 = arith.constant 0 : index
      %c0_17 = arith.constant 0 : index
      %21 = vector.load %arg6[%c0_16, %c0_17] : memref<16x128xf32, #tpu.memory_space<vmem>>, vector<16x128xf32>
      %22 = vector.shape_cast %21 : vector<16x128xf32> to vector<2x8x128xf32>
      %cst_18 = arith.constant dense<0.000000e+00> : vector<8x128xf32>
      %23 = vector.multi_reduction <add>, %22, %cst_18 [0] : vector<2x8x128xf32> to vector<8x128xf32>
      %c0_19 = arith.constant 0 : index
      %c0_20 = arith.constant 0 : index
      %c0_21 = arith.constant 0 : index
      %24 = vector.load %arg4[%c0_19, %c0_20, %c0_21] : memref<1x16x128xf32, #tpu.memory_space<vmem>>, vector<1x8x128xf32>
      %25 = vector.shape_cast %24 : vector<1x8x128xf32> to vector<8x128xf32>
      %26 = vector.shape_cast %20 : vector<8x128xf32> to vector<1x8x128xf32>
      tpu.vector_store %arg4[%c0_19, %c0_20, %c0_21], %26 {strides = array<i32>} : memref<1x16x128xf32, #tpu.memory_space<vmem>>, vector<1x8x128xf32>,
      %c0_22 = arith.constant 0 : index
      %c8 = arith.constant 8 : index
      %c0_23 = arith.constant 0 : index
      %27 = vector.load %arg4[%c0_22, %c8, %c0_23] : memref<1x16x128xf32, #tpu.memory_space<vmem>>, vector<1x8x128xf32>
      %28 = vector.shape_cast %27 : vector<1x8x128xf32> to vector<8x128xf32>
      %29 = vector.shape_cast %23 : vector<8x128xf32> to vector<1x8x128xf32>
      tpu.vector_store %arg4[%c0_22, %c8, %c0_23], %29 {strides = array<i32>} : memref<1x16x128xf32, #tpu.memory_space<vmem>>, vector<1x8x128xf32>,
    } else {
    }
    return
  }
  func.func @transform_0(%arg0: i32, %arg1: i32) -> (i32, i32) {
    %c1_i32 = arith.constant 1 : i32
    %0 = arith.muli %arg0, %c1_i32 : i32
    %1 = arith.addi %0, %arg1 : i32
    %c0_i32 = arith.constant 0 : i32
    %2 = arith.minsi %1, %c0_i32 : i32
    %c0_i32_0 = arith.constant 0 : i32
    %c0_i32_1 = arith.constant 0 : i32
    return %2, %c0_i32_0 : i32, i32
  }
  func.func @transform_1(%arg0: i32, %arg1: i32) -> (i32, i32) {
    %c1_i32 = arith.constant 1 : i32
    %0 = arith.muli %arg0, %c1_i32 : i32
    %1 = arith.addi %0, %arg1 : i32
    %c0_i32 = arith.constant 0 : i32
    %2 = arith.minsi %1, %c0_i32 : i32
    %c0_i32_0 = arith.constant 0 : i32
    %c0_i32_1 = arith.constant 0 : i32
    return %2, %c0_i32_0 : i32, i32
  }
  func.func @transform_2(%arg0: i32, %arg1: i32) -> (i32, i32, i32) {
    %c0_i32 = arith.constant 0 : i32
    %c0_i32_0 = arith.constant 0 : i32
    %c0_i32_1 = arith.constant 0 : i32
    return %arg0, %c0_i32, %c0_i32_0 : i32, i32, i32
  }
}

</mosaic_0001>

<llo_original>
// kernel: tpu_custom_call.1
$region0: #{tpu_custom_call.1}
  #allocation0 [shape = 'u32[]', space=smem, size = 0x4, offset = 0x4, fixed_abs, tag = 'smem constant byte address 0x4 - core index']
  #allocation1 [shape = 'u32[72,128]{1,0:T(1,128)}', space=vmem, size = 0x9000, scoped, tag = 'internal scratch']
  #allocation2 [shape = 'f32[16,128]{1,0:T(8,128)}', space=vmem, size = 0x2000, scoped, tag = 'scratch operand']
  #allocation3 [shape = 'f32[16,128]{1,0:T(8,128)}', space=vmem, size = 0x2000, scoped, tag = 'scratch operand']
  %s0 = inlined_call_operand.hbm [shape: f32[16,128], index: 0, kind: input, shape index: {}]
  %s1 = inlined_call_operand.hbm [shape: f32[16,128], index: 1, kind: input, shape index: {}]
  %s2 = inlined_call_operand.hbm [shape: f32[1,16,128], index: 2, kind: output, shape index: {}]
  %s3 = sld [smem:[#allocation0]]
  $region34: #{tpu_custom_call.1} parent=0
    _
  %s5 = ssub.s32 1, %s3
  %s6 = scalar_select 0, %s5, %s3
  $region1: #{tpu_custom_call.1} parent=0
    #allocation4 [shape = 'u8[8192]{0}', space=vmem, size = 0x2000, scoped, tag = 'input window, operand 0, single buffered']
    #allocation5 [shape = 's32[1]{0}', space=sflag, size = 0x4, scoped, tag = 'scoped memory for tpu_custom_call.1']
    #allocation6 [shape = 's32[1]{0}', space=sflag, size = 0x4, scoped, tag = 'scoped memory for tpu_custom_call.1']
    #allocation7 [shape = 'u8[8192]{0}', space=vmem, size = 0x2000, scoped, tag = 'input window, operand 1, single buffered']
    #allocation8 [shape = 's32[1]{0}', space=sflag, size = 0x4, scoped, tag = 'scoped memory for tpu_custom_call.1']
    #allocation9 [shape = 'u8[8192]{0}', space=vmem, size = 0x2000, scoped, tag = 'output window, operand 0, single buffered']
    %7 = vsyncpa [#allocation5], 0
    %8 = vsyncpa [#allocation8], 0
    %9 = vsyncpa [#allocation6], 0
    // Predicated region
    $region2: #{tpu_custom_call.1} parent=1 // pred_check
      _
    $region3: #{tpu_custom_call.1} parent=1 // pred_check_branch
      %11 = sbr.rel (0) target = $region5
    $region4: #{tpu_custom_call.1} parent=1 // pred_region
      %s12 = sadd.s32 0, 0
      %p13 = scmp.lt.s32.totalorder %s12, 0
      %s14 = scalar_select %p13, %s12, 0
      %s15 = smul.u32 2, %s14
      %17 = vsyncadd [#allocation5], 0
      %s18 = smul.addr %s15, 8
      %s19 = scalar_lea.hbm %s0, %s18
      %s20 = sshll.u32 %s19, 4
      %s21 = int_to_ptr.hbm [resolvable:$true] %s20
      %s22 = sshll.u32 [#allocation4], 4
      %s23 = int_to_ptr.vmem [resolvable:$true] %s22
      %28 = dma.hbm_to_vmem [thread:$0]  %s21, 256, %s23, [#allocation5], 128, 128, 8
    $region5: #{tpu_custom_call.1} parent=1 // pred_fallthru
      _
    // Predicated region
    $region6: #{tpu_custom_call.1} parent=1 // pred_check
      _
    $region7: #{tpu_custom_call.1} parent=1 // pred_check_branch
      %30 = sbr.rel (0) target = $region9
    $region8: #{tpu_custom_call.1} parent=1 // pred_region
      %s31 = sadd.s32 0, 0
      %p32 = scmp.lt.s32.totalorder %s31, 0
      %s33 = scalar_select %p32, %s31, 0
      %s34 = smul.u32 2, %s33
      %36 = vsyncadd [#allocation8], 0
      %s37 = smul.addr %s34, 8
      %s38 = scalar_lea.hbm %s1, %s37
      %s39 = sshll.u32 %s38, 4
      %s40 = int_to_ptr.hbm [resolvable:$true] %s39
      %s41 = sshll.u32 [#allocation7], 4
      %s42 = int_to_ptr.vmem [resolvable:$true] %s41
      %47 = dma.hbm_to_vmem [thread:$0]  %s40, 256, %s42, [#allocation8], 128, 128, 8
    $region9: #{tpu_custom_call.1} parent=1 // pred_fallthru
      _
    // Predicated region
    $region10: #{tpu_custom_call.1} parent=1 // pred_check
      _
    $region11: #{tpu_custom_call.1} parent=1 // pred_check_branch
      %49 = sbr.rel (0) target = $region13
    $region12: #{tpu_custom_call.1} parent=1 // pred_region
      %51 = dma.done [#allocation5], 256
    $region13: #{tpu_custom_call.1} parent=1 // pred_fallthru
      _
    // Predicated region
    $region14: #{tpu_custom_call.1} parent=1 // pred_check
      _
    $region15: #{tpu_custom_call.1} parent=1 // pred_check_branch
      %53 = sbr.rel (0) target = $region17
    $region16: #{tpu_custom_call.1} parent=1 // pred_region
      %55 = dma.done [#allocation8], 256
    $region17: #{tpu_custom_call.1} parent=1 // pred_fallthru
      _
    %s56 = sadd.s32 0, 0
    %p57 = scmp.lt.s32.totalorder %s56, 0
    %s58 = scalar_select %p57, %s56, 0
    %s59 = smul.u32 2, %s58
    %s60 = sadd.s32 0, 0
    %p61 = scmp.lt.s32.totalorder %s60, 0
    %s62 = scalar_select %p61, %s60, 0
    %s63 = smul.u32 2, %s62
    %p64 = scmp.eq.s32.totalorder 0, 0
    // Predicated region
    $region18: #{tpu_custom_call.1} parent=1 // pred_check
      %p65 = pneg %p64
    $region19: #{tpu_custom_call.1} parent=1 // pred_check_branch
      %67 = sbr.rel (%p65) target = $region21
    $region20: #{tpu_custom_call.1} parent=1 // pred_region
      %68 = vst [vmem:[#allocation2] sm:$0xff] 0.0
      %69 = vst [vmem:[#allocation2 + $0x8] sm:$0xff] 0.0
      %70 = vst [vmem:[#allocation3] sm:$0xff] 0.0
      %71 = vst [vmem:[#allocation3 + $0x8] sm:$0xff] 0.0
    $region21: #{tpu_custom_call.1} parent=1 // pred_fallthru
      _
    %v72 = vld [vmem:[#allocation4] sm:$0xff]
    %v73 = vld [vmem:[#allocation4 + $0x8] sm:$0xff]
    %v74 = vld [vmem:[#allocation7] sm:$0xff]
    %v75 = vld [vmem:[#allocation7 + $0x8] sm:$0xff]
    %v76 = vmul.f32 %v72, %v74
    %v77 = vmul.f32 %v73, %v75
    %v78 = vmul.f32 %v72, %v72
    %v79 = vmul.f32 %v73, %v73
    %v80 = vmul.f32 %v74, %v74
    %v81 = vmul.f32 %v75, %v75
    %v82 = vadd.f32 %v78, %v80
    %v83 = vadd.f32 %v79, %v81
    %v84 = vld [vmem:[#allocation2] sm:$0xff]
    %v85 = vld [vmem:[#allocation2 + $0x8] sm:$0xff]
    %v86 = vadd.f32 %v84, %v76
    %v87 = vadd.f32 %v85, %v77
    %88 = vst [vmem:[#allocation2] sm:$0xff] %v86
    %89 = vst [vmem:[#allocation2 + $0x8] sm:$0xff] %v87
    %v90 = vld [vmem:[#allocation3] sm:$0xff]
    %v91 = vld [vmem:[#allocation3 + $0x8] sm:$0xff]
    %v92 = vadd.f32 %v90, %v82
    %v93 = vadd.f32 %v91, %v83
    %94 = vst [vmem:[#allocation3] sm:$0xff] %v92
    %95 = vst [vmem:[#allocation3 + $0x8] sm:$0xff] %v93
    // Predicated region
    $region22: #{tpu_custom_call.1} parent=1 // pred_check
      %p96 = pneg %p64
    $region23: #{tpu_custom_call.1} parent=1 // pred_check_branch
      %98 = sbr.rel (%p96) target = $region25
    $region24: #{tpu_custom_call.1} parent=1 // pred_region
      %v99 = vld [vmem:[#allocation2] sm:$0xff]
      %v100 = vld [vmem:[#allocation2 + $0x8] sm:$0xff]
      %v101 = vadd.f32 %v99, %v100
      %v102 = vld [vmem:[#allocation3] sm:$0xff]
      %v103 = vld [vmem:[#allocation3 + $0x8] sm:$0xff]
      %v104 = vadd.f32 %v102, %v103
      %105 = vst [vmem:[#allocation9] sm:$0xff] %v101
      %106 = vst [vmem:[#allocation9 + $0x8] sm:$0xff] %v104
    $region25: #{tpu_custom_call.1} parent=1 // pred_fallthru
      _
    // Predicated region
    $region26: #{tpu_custom_call.1} parent=1 // pred_check
      _
    $region27: #{tpu_custom_call.1} parent=1 // pred_check_branch
      %108 = sbr.rel (0) target = $region29
    $region28: #{tpu_custom_call.1} parent=1 // pred_region
      %110 = vsyncadd [#allocation6], 0
      %s111 = sshll.u32 [#allocation9], 4
      %s112 = int_to_ptr.vmem [resolvable:$true] %s111
      %s113 = sshll.u32 %s2, 4
      %s114 = int_to_ptr.hbm [resolvable:$true] %s113
      %119 = dma.vmem_to_hbm [thread:$0]  %s112, 256, %s114, [#allocation6], 128, 128, 8
    $region29: #{tpu_custom_call.1} parent=1 // pred_fallthru
      _
    // Predicated region
    $region30: #{tpu_custom_call.1} parent=1 // pred_check
      _
    $region31: #{tpu_custom_call.1} parent=1 // pred_check_branch
      %121 = sbr.rel (0) target = $region33
    $region32: #{tpu_custom_call.1} parent=1 // pred_region
      %123 = dma.done [#allocation6], 256
    $region33: #{tpu_custom_call.1} parent=1 // pred_fallthru
      _
    %124 = vsyncpa [#allocation5], 1
    %125 = vsyncpa [#allocation8], 1
    %126 = vsyncpa [#allocation6], 1

</llo_original>
